<compile_context>
chip_gen: v7x
topology: tpu7x:2x2x1
jax: 0.10.0
libtpu: 0.0.40
codegen_flags: <defaults>
</compile_context>

<pallas_src>
import math

import jax
import jax.numpy as jnp
import numpy as np
from jax.experimental import pallas as pl
from jax.experimental.pallas import tpu as pltpu

INPUT_DIM = 16    # kdim = vdim
OUTPUT_DIM = 32   # embed_dim of the MultiheadAttention / seed-vector width
NUM_HEADS = 4
HEAD_DIM = OUTPUT_DIM // NUM_HEADS
SEQ = 8
BATCH = 3

MASK_WEIGHT = 1e30   # additive key_padding_mask magnitude (rides through the fused matmul)


def pma_kernel(x_ref, keep_ref, wsv_ref, wo_ref, o_ref):
    # x_ref   : (TB, S, Din+2) block  = [x | 1 | (mask-1)]
    # keep_ref: (TB, 1) f32, 1.0 if the row has >=1 valid key else 0.0 (wrapper-precomputed)
    # wsv_ref : (Din+2, 2E) fused weight; lanes [0,E): scaled head-replicated scores with
    #           biases + additive mask folded in, lanes [E,2E): V projection (+bias)
    # wo_ref  : (E+1, E)  rows [0,E) = Wo.T, row E = bo
    # o_ref   : (TB, E)
    TB, S, Dp = x_ref.shape
    E = o_ref.shape[-1]

    # One MXU pass for scores + values (review item 1): (TB*S, Din+2) @ (Din+2, 2E).
    # The (TB,S,.) <-> (TB*S,.) reshapes are free relayouts because S == 8 equals the
    # sublane count; for general S, flatten to (B*S, .) in the wrapper instead.
    x2 = x_ref[...].reshape(TB * S, Dp)
    sv = jnp.dot(x2, wsv_ref[...], preferred_element_type=jnp.float32)
    sv = sv.reshape(TB, S, 2 * E)

    s = sv[..., :E]   # (TB,S,E) masked logits (the -1e30 padding bias was added by the MXU)
    v = sv[..., E:]   # offset-E lane slice == the single XLU lane rotate the review suggested
                      # (equivalent to pltpu.roll(sv, shift=E, axis=-1)[..., :E])

    # Masked softmax over S with deferred normalization (review item 2).
    smax = jnp.max(s, axis=1, keepdims=True)            # (TB,1,E)
    p = jnp.exp(s - smax)                               # masked keys underflow to exactly 0
    denom = jnp.sum(p, axis=1)                          # (TB,E)
    ctx_un = jnp.sum(p * v, axis=1)                     # (TB,E) unnormalized per-head context
    ctx = ctx_un * pl.reciprocal(denom, approx=True)    # EUP instead of a (TB,S,E) VPU divide

    out = jnp.dot(ctx.astype(wo_ref.dtype), wo_ref[:E, :],
                  preferred_element_type=jnp.float32) + wo_ref[E:, :]

    # torch.nan_to_num: a fully-masked row yields NaN in torch's softmax and becomes 0
    # after nan_to_num; the wrapper-precomputed `keep` factor reproduces that exactly.
    o_ref[...] = out * keep_ref[...]


def pooling_multihead_attention(embedding_set, attn_mask, params, *,
                                num_heads=NUM_HEADS, batch_block=None,
                                compute_dtype=jnp.float32):
    """embedding_set: (B, S, input_dim) f32; attn_mask: (B, S) bool, True = valid key.

    Returns (B, output_dim), matching torch.nan_to_num(attn_output[0]).
    """
    B, S, Din = embedding_set.shape
    E = params["wq"].shape[0]
    dh = E // num_heads
    scale = 1.0 / math.sqrt(dh)
    hp = jax.lax.Precision.HIGHEST
    f32 = jnp.float32

    # ---- batch-invariant weight folding (plain JAX, HIGHEST precision) -------------
    # q = seed @ Wq.T + bq, expanded to a block-diagonal matrix that both applies the
    # per-head dot product AND replicates each head's logit across its HEAD_DIM lanes;
    # folded into Wk/bk together with the 1/sqrt(dh) scale.
    q = jnp.dot(params["seed"], params["wq"].T, precision=hp) + params["bq"]      # (1,E)
    head_id = jnp.arange(E) // dh
    blockdiag = (head_id[:, None] == head_id[None, :]).astype(f32)                # (E,E)
    q_expand = q[0][:, None] * blockdiag                                          # (E,E)
    w_score = jnp.dot(params["wk"].T, q_expand, precision=hp) * scale             # (Din,E)
    b_score = jnp.dot(params["bk"], q_expand, precision=hp) * scale               # (1,E)

    # Fused projection weight (review items 1, 3, 4):
    #   rows [0,Din) : [ w_score | Wv.T ]
    #   row   Din    : [ b_score | bv   ]   <- picked up by the ones column of x_aug
    #   row   Din+1  : [ 1e30*1  | 0    ]   <- picked up by the (mask-1) column of x_aug,
    #                                          i.e. additive key_padding_mask inside the MXU
    w_sv = jnp.concatenate(
        [jnp.concatenate([w_score, params["wv"].T], axis=1),
         jnp.concatenate([b_score, params["bv"]], axis=1),
         jnp.concatenate([jnp.full((1, E), MASK_WEIGHT, f32),
                          jnp.zeros((1, E), f32)], axis=1)],
        axis=0)                                                                   # (Din+2, 2E)
    w_o = jnp.concatenate([params["wo"].T, params["bo"]], axis=0)                 # (E+1, E)

    # ---- per-call input packing (review items 3, 4) ---------------------------------
    mask_f = attn_mask.astype(f32)
    x_aug = jnp.concatenate(
        [embedding_set.astype(f32),
         jnp.ones((B, S, 1), f32),
         (mask_f - 1.0)[..., None]],                  # 0.0 = valid key, -1.0 = padded key
        axis=-1)                                                                  # (B,S,Din+2)
    keep = jnp.any(attn_mask, axis=1).astype(f32)[:, None]                        # (B,1)

    # bf16 is MXU-native on v5e/v6e/v7x (review item 6); all folding above was done in f32.
    x_aug = x_aug.astype(compute_dtype)
    w_sv = w_sv.astype(compute_dtype)
    w_o = w_o.astype(compute_dtype)

    # ---- batch blocking --------------------------------------------------------------
    # Single grid step for small B.  For large B pass batch_block (multiple of 8) so the
    # "parallel" batch axis has >=2 steps (v7x: both TensorCores) and per-step (TB,S,2E)
    # slabs fit VMEM (v7x 64 MiB physical: keep TB in the low thousands; raise
    # vmem_limit_bytes via pltpu.CompilerParams only if needed).
    if batch_block is None or batch_block >= B:
        TB = B
    else:
        TB = max(8, (min(batch_block, B) // 8) * 8)   # (8,128) out-tile: TB % 8 == 0
    Bp = ((B + TB - 1) // TB) * TB
    if Bp != B:
        x_aug = jnp.pad(x_aug, ((0, Bp - B), (0, 0), (0, 0)))
        keep = jnp.pad(keep, ((0, Bp - B), (0, 0)))   # keep = 0 -> padded rows output 0

    full = lambda i: (0, 0)  # noqa: E731  grid-invariant weights: same block every step

    out = pl.pallas_call(
        pma_kernel,
        out_shape=jax.ShapeDtypeStruct((Bp, E), jnp.float32),
        grid_spec=pltpu.PrefetchScalarGridSpec(
            num_scalar_prefetch=0,
            grid=(Bp // TB,),
            in_specs=[
                pl.BlockSpec((TB, S, Din + 2), lambda i: (i, 0, 0)),   # [x | 1 | mask-1]
                pl.BlockSpec((TB, 1), lambda i: (i, 0)),               # keep
                pl.BlockSpec((Din + 2, 2 * E), full),                  # fused [score | V] weight
                pl.BlockSpec((E + 1, E), full),                        # [Wo.T ; bo]
            ],
            # E=32 < 128 lanes -> masked store; accepted for tiny E/B per the review.
            out_specs=pl.BlockSpec((TB, E), lambda i: (i, 0)),
        ),
        compiler_params=pltpu.CompilerParams(
            dimension_semantics=("parallel",),
        ),
    )(x_aug, keep, w_sv, w_o)

    return out if Bp == B else out[:B]


def pma_reference(embedding_set, attn_mask, params):
    """Pure-JAX reference reproducing torch.nn.MultiheadAttention semantics."""
    B, S, _ = embedding_set.shape
    E = params["wq"].shape[0]
    q = (params["seed"] @ params["wq"].T + params["bq"]).reshape(NUM_HEADS, HEAD_DIM)
    k = (jnp.einsum("bsd,ed->bse", embedding_set, params["wk"]) + params["bk"]
         ).reshape(B, S, NUM_HEADS, HEAD_DIM)
    v = (jnp.einsum("bsd,ed->bse", embedding_set, params["wv"]) + params["bv"]
         ).reshape(B, S, NUM_HEADS, HEAD_DIM)
    s = jnp.einsum("hd,bshd->bhs", q, k) / math.sqrt(HEAD_DIM)
    s = jnp.where(attn_mask[:, None, :], s, -jnp.inf)
    smax = jnp.max(s, axis=-1, keepdims=True)
    p = jnp.exp(s - smax)
    p = p / jnp.sum(p, axis=-1, keepdims=True)        # NaN for fully-masked rows (like torch)
    ctx = jnp.einsum("bhs,bshd->bhd", p, v).reshape(B, E)
    out = ctx @ params["wo"].T + params["bo"]
    return jnp.nan_to_num(out)


def make_params(key):
    def xavier(k, shape):
        fan_out, fan_in = shape
        lim = math.sqrt(6.0 / (fan_in + fan_out))
        return jax.random.uniform(k, shape, jnp.float32, -lim, lim)

    ks = jax.random.split(key, 9)
    return {
        "seed": xavier(ks[0], (1, OUTPUT_DIM)),            # nn.Parameter(1,1,E), stored as (1,E)
        "wq": xavier(ks[1], (OUTPUT_DIM, OUTPUT_DIM)),     # q_proj_weight
        "wk": xavier(ks[2], (OUTPUT_DIM, INPUT_DIM)),      # k_proj_weight
        "wv": xavier(ks[3], (OUTPUT_DIM, INPUT_DIM)),      # v_proj_weight
        "bq": 0.02 * jax.random.normal(ks[4], (1, OUTPUT_DIM), jnp.float32),
        "bk": 0.02 * jax.random.normal(ks[5], (1, OUTPUT_DIM), jnp.float32),
        "bv": 0.02 * jax.random.normal(ks[6], (1, OUTPUT_DIM), jnp.float32),
        "wo": xavier(ks[7], (OUTPUT_DIM, OUTPUT_DIM)),     # out_proj.weight
        "bo": 0.02 * jax.random.normal(ks[8], (1, OUTPUT_DIM), jnp.float32),
    }


if __name__ == "__main__":
    key = jax.random.PRNGKey(0)
    k_param, k_x1, k_x2, k_m2 = jax.random.split(key, 4)
    params = make_params(k_param)

    # --- test 1: shipped sizes (B=3), f32 compute, single grid step -------------------
    x1 = jax.random.normal(k_x1, (BATCH, SEQ, INPUT_DIM), jnp.float32)
    # batch 0: all keys valid; batch 1: partially padded; batch 2: fully padded
    mask1 = jnp.array(
        [[True] * SEQ,
         [True] * 5 + [False] * (SEQ - 5),
         [False] * SEQ],
        dtype=jnp.bool_,
    )
    out1 = jax.block_until_ready(
        pooling_multihead_attention(x1, mask1, params, compute_dtype=jnp.float32))
    ref1 = jax.block_until_ready(pma_reference(x1, mask1, params))
    assert out1.shape == (BATCH, OUTPUT_DIM)
    # tolerance accounts for pl.reciprocal(approx=True) in the deferred normalization
    np.testing.assert_allclose(np.asarray(out1), np.asarray(ref1), rtol=2e-3, atol=2e-3)

    # --- test 2: larger batch, 2 "parallel" grid steps, bf16 MXU path -----------------
    B2 = 16
    x2 = jax.random.normal(k_x2, (B2, SEQ, INPUT_DIM), jnp.float32)
    mask2 = jax.random.bernoulli(k_m2, 0.7, (B2, SEQ))
    mask2 = mask2.at[0].set(False)           # include a fully-masked row
    out2 = jax.block_until_ready(
        pooling_multihead_attention(x2, mask2, params, batch_block=8,
                                    compute_dtype=jnp.bfloat16))
    ref2 = jax.block_until_ready(pma_reference(x2, mask2, params))
    assert out2.shape == (B2, OUTPUT_DIM)
    np.testing.assert_allclose(np.asarray(out2), np.asarray(ref2), rtol=2e-2, atol=2e-2)

    print("KERNEL_OK")
</pallas_src>

<mosaic_0001>
module attributes {stable_mosaic.version = 11 : i64} {
  func.func @pma_kernel(%arg0: i32, %arg1: memref<3x8x18xf32, #tpu.memory_space<vmem>>, %arg2: memref<3x1xf32, #tpu.memory_space<vmem>>, %arg3: memref<18x64xf32, #tpu.memory_space<vmem>>, %arg4: memref<33x32xf32, #tpu.memory_space<vmem>>, %arg5: memref<3x32xf32, #tpu.memory_space<vmem>>) attributes {dimension_semantics = [#tpu.dimension_semantics<parallel>], iteration_bounds = array<i64: 1>, scalar_prefetch = 0 : i64, scratch_operands = 0 : i64, tpu.core_type = #tpu.core_type<tc>, window_params = [{transform_indices = @transform_0, window_bounds = array<i64: 3, 8, 18>}, {transform_indices = @transform_1, window_bounds = array<i64: 3, 1>}, {pipeline_mode = #tpu.pipeline_mode<synchronous>, transform_indices = @transform_2, window_bounds = array<i64: 18, 64>}, {pipeline_mode = #tpu.pipeline_mode<synchronous>, transform_indices = @transform_3, window_bounds = array<i64: 33, 32>}, {transform_indices = @transform_4, window_bounds = array<i64: 3, 32>}]} {
    %c0 = arith.constant 0 : index
    %c0_0 = arith.constant 0 : index
    %c0_1 = arith.constant 0 : index
    %0 = vector.load %arg1[%c0, %c0_0, %c0_1] : memref<3x8x18xf32, #tpu.memory_space<vmem>>, vector<3x8x18xf32>
    %1 = vector.shape_cast %0 : vector<3x8x18xf32> to vector<24x18xf32>
    %c0_2 = arith.constant 0 : index
    %c0_3 = arith.constant 0 : index
    %2 = vector.load %arg3[%c0_2, %c0_3] : memref<18x64xf32, #tpu.memory_space<vmem>>, vector<18x64xf32>
    %cst = arith.constant dense<0.000000e+00> : vector<24x64xf32>
    %3 = tpu.matmul %1, %2, %cst {dimension_numbers = #tpu.dot_dimension_numbers<[1], [0], [0], [1], [0, 0, 1, 1], [], []>} : vector<24x18xf32>, vector<18x64xf32>, vector<24x64xf32> -> vector<24x64xf32>
    %4 = vector.shape_cast %3 : vector<24x64xf32> to vector<3x8x64xf32>
    %5 = vector.extract_strided_slice %4 {offsets = [0, 0, 0], sizes = [3, 8, 32], strides = [1, 1, 1]} : vector<3x8x64xf32> to vector<3x8x32xf32>
    %6 = vector.extract_strided_slice %4 {offsets = [0, 0, 32], sizes = [3, 8, 32], strides = [1, 1, 1]} : vector<3x8x64xf32> to vector<3x8x32xf32>
    %cst_4 = arith.constant dense<0xFF800000> : vector<3x32xf32>
    %7 = vector.multi_reduction <maximumf>, %5, %cst_4 [1] : vector<3x8x32xf32> to vector<3x32xf32>
    %8 = vector.shape_cast %7 : vector<3x32xf32> to vector<3x1x32xf32>
    %9 = vector.broadcast %8 : vector<3x1x32xf32> to vector<3x8x32xf32>
    %10 = arith.subf %5, %9 : vector<3x8x32xf32>
    %11 = math.exp %10 : vector<3x8x32xf32>
    %cst_5 = arith.constant dense<0.000000e+00> : vector<3x32xf32>
    %12 = vector.multi_reduction <add>, %11, %cst_5 [1] : vector<3x8x32xf32> to vector<3x32xf32>
    %13 = arith.mulf %11, %6 : vector<3x8x32xf32>
    %cst_6 = arith.constant dense<0.000000e+00> : vector<3x32xf32>
    %14 = vector.multi_reduction <add>, %13, %cst_6 [1] : vector<3x8x32xf32> to vector<3x32xf32>
    %15 = tpu.reciprocal %12 {approx = true} : vector<3x32xf32> -> vector<3x32xf32>
    %16 = arith.mulf %14, %15 : vector<3x32xf32>
    %c0_7 = arith.constant 0 : index
    %c0_8 = arith.constant 0 : index
    %17 = vector.load %arg4[%c0_7, %c0_8] : memref<33x32xf32, #tpu.memory_space<vmem>>, vector<32x32xf32>
    %cst_9 = arith.constant dense<0.000000e+00> : vector<3x32xf32>
    %18 = tpu.matmul %16, %17, %cst_9 {dimension_numbers = #tpu.dot_dimension_numbers<[1], [0], [0], [1], [0, 0, 1, 1], [], []>} : vector<3x32xf32>, vector<32x32xf32>, vector<3x32xf32> -> vector<3x32xf32>
    %c32 = arith.constant 32 : index
    %c0_10 = arith.constant 0 : index
    %19 = vector.load %arg4[%c32, %c0_10] : memref<33x32xf32, #tpu.memory_space<vmem>>, vector<1x32xf32>
    %20 = vector.broadcast %19 : vector<1x32xf32> to vector<3x32xf32>
    %21 = arith.addf %18, %20 : vector<3x32xf32>
    %c0_11 = arith.constant 0 : index
    %c0_12 = arith.constant 0 : index
    %22 = vector.load %arg2[%c0_11, %c0_12] : memref<3x1xf32, #tpu.memory_space<vmem>>, vector<3x1xf32>
    %23 = vector.broadcast %22 : vector<3x1xf32> to vector<3x32xf32>
    %24 = arith.mulf %21, %23 : vector<3x32xf32>
    %c0_13 = arith.constant 0 : index
    %c0_14 = arith.constant 0 : index
    %25 = vector.load %arg5[%c0_13, %c0_14] : memref<3x32xf32, #tpu.memory_space<vmem>>, vector<3x32xf32>
    tpu.vector_store %arg5[%c0_13, %c0_14], %24 {strides = array<i32>} : memref<3x32xf32, #tpu.memory_space<vmem>>, vector<3x32xf32>,
    return
  }
  func.func @transform_0(%arg0: i32) -> (i32, i32, i32) {
    %c0_i32 = arith.constant 0 : i32
    %c0_i32_0 = arith.constant 0 : i32
    %c0_i32_1 = arith.constant 0 : i32
    return %arg0, %c0_i32, %c0_i32_0 : i32, i32, i32
  }
  func.func @transform_1(%arg0: i32) -> (i32, i32) {
    %c0_i32 = arith.constant 0 : i32
    %c0_i32_0 = arith.constant 0 : i32
    return %arg0, %c0_i32 : i32, i32
  }
  func.func @transform_2(%arg0: i32) -> (i32, i32) {
    %c0_i32 = arith.constant 0 : i32
    %c0_i32_0 = arith.constant 0 : i32
    %c0_i32_1 = arith.constant 0 : i32
    return %c0_i32, %c0_i32_0 : i32, i32
  }
  func.func @transform_3(%arg0: i32) -> (i32, i32) {
    %c0_i32 = arith.constant 0 : i32
    %c0_i32_0 = arith.constant 0 : i32
    %c0_i32_1 = arith.constant 0 : i32
    return %c0_i32, %c0_i32_0 : i32, i32
  }
  func.func @transform_4(%arg0: i32) -> (i32, i32) {
    %c0_i32 = arith.constant 0 : i32
    %c0_i32_0 = arith.constant 0 : i32
    return %arg0, %c0_i32 : i32, i32
  }
}

</mosaic_0001>

<llo_original>
// kernel: tpu_custom_call.1
$region0: #{tpu_custom_call.1}
  #allocation0 [shape = 'u32[]', space=smem, size = 0x4, offset = 0x4, fixed_abs, tag = 'smem constant byte address 0x4 - core index']
  #allocation1 [shape = 'u32[144,128]{1,0:T(1,128)}', space=vmem, size = 0x12000, scoped, tag = 'internal scratch']
  %s0 = inlined_call_operand.vmem [shape: f32[3,8,18], index: 0, kind: input, shape index: {}]
  %s1 = inlined_call_operand.vmem [shape: f32[3,1], index: 1, kind: input, shape index: {}]
  %s2 = inlined_call_operand.vmem [shape: f32[18,64], index: 2, kind: input, shape index: {}]
  %s3 = inlined_call_operand.vmem [shape: f32[33,32], index: 3, kind: input, shape index: {}]
  %s4 = inlined_call_operand.hbm [shape: f32[3,32], index: 4, kind: output, shape index: {}]
  %s5 = sld [smem:[#allocation0]]
  $region26: #{tpu_custom_call.1} parent=0
    _
  %s7 = ssub.s32 1, %s5
  %s8 = scalar_select 0, %s7, %s5
  $region1: #{tpu_custom_call.1} parent=0
    #allocation2 [shape = 'u8[2048]{0}', space=vmem, size = 0x800, scoped, tag = 'output window, operand 0, single buffered']
    #allocation3 [shape = 's32[1]{0}', space=sflag, size = 0x4, scoped, tag = 'scoped memory for tpu_custom_call.1']
    %9 = vsyncpa [#allocation3], 0
    // Predicated region
    $region2: #{tpu_custom_call.1} parent=1 // pred_check
      _
    $region3: #{tpu_custom_call.1} parent=1 // pred_check_branch
      %11 = sbr.rel (0) target = $region5
    $region4: #{tpu_custom_call.1} parent=1 // pred_region
      _
    $region5: #{tpu_custom_call.1} parent=1 // pred_fallthru
      _
    // Predicated region
    $region6: #{tpu_custom_call.1} parent=1 // pred_check
      _
    $region7: #{tpu_custom_call.1} parent=1 // pred_check_branch
      %13 = sbr.rel (0) target = $region9
    $region8: #{tpu_custom_call.1} parent=1 // pred_region
      _
    $region9: #{tpu_custom_call.1} parent=1 // pred_fallthru
      _
    // Predicated region
    $region10: #{tpu_custom_call.1} parent=1 // pred_check
      _
    $region11: #{tpu_custom_call.1} parent=1 // pred_check_branch
      %15 = sbr.rel (0) target = $region13
    $region12: #{tpu_custom_call.1} parent=1 // pred_region
      _
    $region13: #{tpu_custom_call.1} parent=1 // pred_fallthru
      _
    // Predicated region
    $region14: #{tpu_custom_call.1} parent=1 // pred_check
      _
    $region15: #{tpu_custom_call.1} parent=1 // pred_check_branch
      %17 = sbr.rel (0) target = $region17
    $region16: #{tpu_custom_call.1} parent=1 // pred_region
      _
    $region17: #{tpu_custom_call.1} parent=1 // pred_fallthru
      _
    %v18 = vld [vmem:[%s0] sm:$0xff]
    %v19 = vld [vmem:[%s0 + $0x8] sm:$0xff]
    %v20 = vld [vmem:[%s0 + $0x10] sm:$0xff]
    %v21 = vld [vmem:[%s2] sm:$0xff]
    %v22 = vld [vmem:[%s2 + $0x8] sm:$0xff]
    %v23 = vld [vmem:[%s2 + $0x10] sm:$0x3]
    %vm24 = vcmask 146432
    %v26 = vsel %vm24, %v18, 0
    %v29 = vsel %vm24, %v19, 0
    %v32 = vsel %vm24, %v20, 0
    %vm34 = vcmask 1041408
    %v36 = vsel %vm34, %v23, 0
    %38 = vmatprep.subr.mxu0 0.0
    %39 = vmatpush1.msra.mxu0 %v21
    %40 = vmatprep.subr.mxu0 0.0
    %41 = vmatpush1.msra.mxu0 %v22
    %42 = vmatprep.subr.mxu0 0.0
    %43 = vmatpush1.msra.mxu0 %v36
    %44 = vmatprep.subr.mxu0 0.0
    %45 = vmatpush1.msra.mxu0 0.0
    %46 = vmatprep.subr.mxu0 0.0
    %47 = vmatpush1.msra.mxu0 0.0
    %48 = vmatprep.subr.mxu0 0.0
    %49 = vmatpush1.msra.mxu0 0.0
    %50 = vmatprep.subr.mxu0 0.0
    %51 = vmatpush1.msra.mxu0 0.0
    %52 = vmatprep.subr.mxu0 0.0
    %53 = vmatpush1.msra.mxu0 0.0
    %54 = vmatprep.subr.mxu0 0.0
    %55 = vmatpush1.msra.mxu0 0.0
    %56 = vmatprep.subr.mxu0 0.0
    %57 = vmatpush1.msra.mxu0 0.0
    %58 = vmatprep.subr.mxu0 0.0
    %59 = vmatpush1.msra.mxu0 0.0
    %60 = vmatprep.subr.mxu0 0.0
    %61 = vmatpush1.msra.mxu0 0.0
    %62 = vmatprep.subr.mxu0 0.0
    %63 = vmatpush1.msra.mxu0 0.0
    %64 = vmatprep.subr.mxu0 0.0
    %65 = vmatpush1.msra.mxu0 0.0
    %66 = vmatprep.subr.mxu0 0.0
    %67 = vmatpush1.msra.mxu0 0.0
    %68 = vmatprep.subr.mxu0 0.0
    %69 = vmatpush1.msra.mxu0 0.0
    %70 = vmatprep.subr.mxu0 0.0
    %71 = vmatpush1.msra.mxu0 0.0
    %72 = vmatprep.subr.mxu0 0.0
    %73 = vmatpush1.msra.mxu0 0.0
    %74 = vmatprep.subr.mxu0 0.0
    %75 = vmatpush1.msra.mxu0 0.0
    %76 = vmatprep.subr.mxu0 0.0
    %77 = vmatpush1.msra.mxu0 0.0
    %78 = vmatprep.subr.mxu0 0.0
    %79 = vmatpush1.msra.mxu0 0.0
    %80 = vmatprep.subr.mxu0 0.0
    %81 = vmatpush1.msra.mxu0 0.0
    %82 = vmatprep.subr.mxu0 0.0
    %83 = vmatpush1.msra.mxu0 0.0
    %84 = vmatprep.subr.mxu0 0.0
    %85 = vmatpush1.msra.mxu0 0.0
    %86 = vmatprep.subr.mxu0 0.0
    %87 = vmatpush1.msra.mxu0 0.0
    %88 = vmatprep.subr.mxu0 0.0
    %89 = vmatpush1.msra.mxu0 0.0
    %90 = vmatprep.subr.mxu0 0.0
    %91 = vmatpush1.msra.mxu0 0.0
    %92 = vmatprep.subr.mxu0 0.0
    %93 = vmatpush1.msra.mxu0 0.0
    %94 = vmatprep.subr.mxu0 0.0
    %95 = vmatpush1.msra.mxu0 0.0
    %96 = vmatprep.subr.mxu0 0.0
    %97 = vmatpush1.msra.mxu0 0.0
    %98 = vmatprep.subr.mxu0 0.0
    %99 = vmatpush1.msra.mxu0 0.0
    %100 = vmatprep.subr.mxu0 0.0
    %101 = vmatpush1.msra.mxu0 0.0
    %102 = vmatprep.mubr.f32.mxu0 0.0
    %103 = vmatmul.mubr.f32.gmra.mrb[0].mxu0 %v26
    %v104 = vpop.f32.mrb[0].mxu0
    %v105 = vadd.f32 0.0, %v104
    %v106 = vpop.f32.mrb[0].mxu0
    %107 = vmatprep.mubr.f32.mxu0 0.0
    %108 = vmatmul.mubr.f32.gmra.mrb[0].mxu0 %v29
    %v109 = vpop.f32.mrb[0].mxu0
    %v110 = vadd.f32 0.0, %v109
    %v111 = vpop.f32.mrb[0].mxu0
    %112 = vmatprep.mubr.f32.mxu0 0.0
    %113 = vmatmul.mubr.f32.gmra.mrb[0].mxu0 %v32
    %v114 = vpop.f32.mrb[0].mxu0
    %v115 = vadd.f32 0.0, %v114
    %v116 = vpop.f32.mrb[0].mxu0
    %117 = vdwg.mxu0
    %vm118 = vcmask 261120
    %v119 = vsel %vm118, %v105, -inf
    %v120 = vrot.slane %v119, 4
    %v121 = vmax.f32 %v119, %v120
    %v122 = vrot.slane %v121, 2
    %v123 = vmax.f32 %v121, %v122
    %v124 = vrot.slane %v123, 1
    %v125 = vmax.f32 %v123, %v124
    %v126 = vsel %vm118, %v110, -inf
    %v127 = vrot.slane %v126, 4
    %v128 = vmax.f32 %v126, %v127
    %v129 = vrot.slane %v128, 2
    %v130 = vmax.f32 %v128, %v129
    %v131 = vrot.slane %v130, 1
    %v132 = vmax.f32 %v130, %v131
    %v133 = vsel %vm118, %v115, -inf
    %v134 = vrot.slane %v133, 4
    %v135 = vmax.f32 %v133, %v134
    %v136 = vrot.slane %v135, 2
    %v137 = vmax.f32 %v135, %v136
    %v138 = vrot.slane %v137, 1
    %v139 = vmax.f32 %v137, %v138
    %v140 = vsub.f32 %v105, %v125
    %v141 = vsub.f32 %v110, %v132
    %v142 = vsub.f32 %v115, %v139
    %v143 = vmul.f32 %v140, 1.442695
    %v144 = vpow.pop %v143
    %v145 = vmul.f32 %v141, 1.442695
    %v146 = vpow.pop %v145
    %v147 = vmul.f32 %v142, 1.442695
    %v148 = vpow.pop %v147
    %v149 = vsel %vm118, %v144, 0.0
    %v150 = vrot.slane %v149, 4
    %v151 = vadd.f32 %v149, %v150
    %v152 = vrot.slane %v151, 2
    %v153 = vadd.f32 %v151, %v152
    %v154 = vrot.slane %v153, 1
    %v155 = vadd.f32 %v153, %v154
    %v156 = vsel %vm118, %v146, 0.0
    %v157 = vrot.slane %v156, 4
    %v158 = vadd.f32 %v156, %v157
    %v159 = vrot.slane %v158, 2
    %v160 = vadd.f32 %v158, %v159
    %v161 = vrot.slane %v160, 1
    %v162 = vadd.f32 %v160, %v161
    %v163 = vsel %vm118, %v148, 0.0
    %v164 = vrot.slane %v163, 4
    %v165 = vadd.f32 %v163, %v164
    %v166 = vrot.slane %v165, 2
    %v167 = vadd.f32 %v165, %v166
    %v168 = vrot.slane %v167, 1
    %v169 = vadd.f32 %v167, %v168
    %173 = vrot.lane.b32.xlu0 %v105, 96
    %v174 = vpop.permute.xlu0 %173
    %175 = vrot.lane.b32.xlu0 %v110, 96
    %v176 = vpop.permute.xlu0 %175
    %177 = vrot.lane.b32.xlu0 %v115, 96
    %v178 = vpop.permute.xlu0 %177
    %v182 = vmul.f32 %v144, %v174
    %v183 = vmul.f32 %v146, %v176
    %v184 = vmul.f32 %v148, %v178
    %v185 = vsel %vm118, %v182, 0.0
    %v186 = vrot.slane %v185, 4
    %v187 = vadd.f32 %v185, %v186
    %v188 = vrot.slane %v187, 2
    %v189 = vadd.f32 %v187, %v188
    %v190 = vrot.slane %v189, 1
    %v191 = vadd.f32 %v189, %v190
    %v192 = vsel %vm118, %v183, 0.0
    %v193 = vrot.slane %v192, 4
    %v194 = vadd.f32 %v192, %v193
    %v195 = vrot.slane %v194, 2
    %v196 = vadd.f32 %v194, %v195
    %v197 = vrot.slane %v196, 1
    %v198 = vadd.f32 %v196, %v197
    %v199 = vsel %vm118, %v184, 0.0
    %v200 = vrot.slane %v199, 4
    %v201 = vadd.f32 %v199, %v200
    %v202 = vrot.slane %v201, 2
    %v203 = vadd.f32 %v201, %v202
    %v204 = vrot.slane %v203, 1
    %v205 = vadd.f32 %v203, %v204
    %v206 = vrcp.pop %v155
    %v207 = vrcp.pop %v162
    %v208 = vrcp.pop %v169
    %v209 = vmul.f32 %v191, %v206
    %v210 = vmul.f32 %v198, %v207
    %v211 = vmul.f32 %v205, %v208
    %v212 = vld [vmem:[%s3] sm:$0xff]
    %v213 = vld [vmem:[%s3 + $0x8] sm:$0xff]
    %v214 = vld [vmem:[%s3 + $0x10] sm:$0xff]
    %v215 = vld [vmem:[%s3 + $0x18] sm:$0xff]
    %v216 = vld [vmem:[%s3 + $0x20] sm:$0x1]
    %v217 = vlaneseq
    %v218 = vshrl.u32 %v217, 7
    %v219 = vsub.s32 0, %v218
    %v220 = vrot.slane %v216, %v219
    %vm224 = vcmask 1041409
    %v225 = vsel %vm224, %v210, %v209
    %vm226 = vcmask 1042434
    %v227 = vsel %vm226, %v211, %v225
    %v228 = vsel %vm118, %v227, 0
    %230 = vmatprep.subr.mxu0 0.0
    %231 = vmatpush1.msra.mxu0 %v212
    %232 = vmatprep.subr.mxu0 0.0
    %233 = vmatpush1.msra.mxu0 %v213
    %234 = vmatprep.subr.mxu0 0.0
    %235 = vmatpush1.msra.mxu0 %v214
    %236 = vmatprep.subr.mxu0 0.0
    %237 = vmatpush1.msra.mxu0 %v215
    %238 = vmatprep.subr.mxu0 0.0
    %239 = vmatpush1.msra.mxu0 0.0
    %240 = vmatprep.subr.mxu0 0.0
    %241 = vmatpush1.msra.mxu0 0.0
    %242 = vmatprep.subr.mxu0 0.0
    %243 = vmatpush1.msra.mxu0 0.0
    %244 = vmatprep.subr.mxu0 0.0
    %245 = vmatpush1.msra.mxu0 0.0
    %246 = vmatprep.subr.mxu0 0.0
    %247 = vmatpush1.msra.mxu0 0.0
    %248 = vmatprep.subr.mxu0 0.0
    %249 = vmatpush1.msra.mxu0 0.0
    %250 = vmatprep.subr.mxu0 0.0
    %251 = vmatpush1.msra.mxu0 0.0
    %252 = vmatprep.subr.mxu0 0.0
    %253 = vmatpush1.msra.mxu0 0.0
    %254 = vmatprep.subr.mxu0 0.0
    %255 = vmatpush1.msra.mxu0 0.0
    %256 = vmatprep.subr.mxu0 0.0
    %257 = vmatpush1.msra.mxu0 0.0
    %258 = vmatprep.subr.mxu0 0.0
    %259 = vmatpush1.msra.mxu0 0.0
    %260 = vmatprep.subr.mxu0 0.0
    %261 = vmatpush1.msra.mxu0 0.0
    %262 = vmatprep.subr.mxu0 0.0
    %263 = vmatpush1.msra.mxu0 0.0
    %264 = vmatprep.subr.mxu0 0.0
    %265 = vmatpush1.msra.mxu0 0.0
    %266 = vmatprep.subr.mxu0 0.0
    %267 = vmatpush1.msra.mxu0 0.0
    %268 = vmatprep.subr.mxu0 0.0
    %269 = vmatpush1.msra.mxu0 0.0
    %270 = vmatprep.subr.mxu0 0.0
    %271 = vmatpush1.msra.mxu0 0.0
    %272 = vmatprep.subr.mxu0 0.0
    %273 = vmatpush1.msra.mxu0 0.0
    %274 = vmatprep.subr.mxu0 0.0
    %275 = vmatpush1.msra.mxu0 0.0
    %276 = vmatprep.subr.mxu0 0.0
    %277 = vmatpush1.msra.mxu0 0.0
    %278 = vmatprep.subr.mxu0 0.0
    %279 = vmatpush1.msra.mxu0 0.0
    %280 = vmatprep.subr.mxu0 0.0
    %281 = vmatpush1.msra.mxu0 0.0
    %282 = vmatprep.subr.mxu0 0.0
    %283 = vmatpush1.msra.mxu0 0.0
    %284 = vmatprep.subr.mxu0 0.0
    %285 = vmatpush1.msra.mxu0 0.0
    %286 = vmatprep.subr.mxu0 0.0
    %287 = vmatpush1.msra.mxu0 0.0
    %288 = vmatprep.subr.mxu0 0.0
    %289 = vmatpush1.msra.mxu0 0.0
    %290 = vmatprep.subr.mxu0 0.0
    %291 = vmatpush1.msra.mxu0 0.0
    %292 = vmatprep.subr.mxu0 0.0
    %293 = vmatpush1.msra.mxu0 0.0
    %294 = vmatprep.mubr.f32.mxu0 0.0
    %295 = vmatmul.mubr.f32.gmra.mrb[0].mxu0 %v228
    %v296 = vpop.f32.mrb[0].mxu0
    %v297 = vadd.f32 %v220, %v296
    %v298 = vpop.f32.mrb[0].mxu0
    %299 = vdwg.mxu0
    %v300 = vld [vmem:[%s1] sm:$0x7]
    %302 = vset.pattern.permute.xlu0 0
    %303 = vperm.xlu0 %302, %v300
    %v304 = vpop.permute.xlu0 %303
    %v306 = vmul.f32 %v297, %v304
    %vm307 = vcmask 256000
    %308 = vst.msk [vmem:[#allocation2] sm:$0x7] %vm307, %v306
    // Predicated region
    $region18: #{tpu_custom_call.1} parent=1 // pred_check
      _
    $region19: #{tpu_custom_call.1} parent=1 // pred_check_branch
      %310 = sbr.rel (0) target = $region21
    $region20: #{tpu_custom_call.1} parent=1 // pred_region
      %s312 = ssub.s32 64, 64
      %313 = vsyncadd [#allocation3], %s312
      %s315 = sshll.u32 [#allocation2], 4
      %s316 = int_to_ptr.vmem [resolvable:$true] %s315
      %318 = dma.vmem_to_hbm [thread:$0]  %s316, 64, %s4, [#allocation3]
    $region21: #{tpu_custom_call.1} parent=1 // pred_fallthru
      _
    // Predicated region
    $region22: #{tpu_custom_call.1} parent=1 // pred_check
      _
    $region23: #{tpu_custom_call.1} parent=1 // pred_check_branch
      %320 = sbr.rel (0) target = $region25
    $region24: #{tpu_custom_call.1} parent=1 // pred_region
      %321 = dma.done [#allocation3], 64
    $region25: #{tpu_custom_call.1} parent=1 // pred_fallthru
      _
    %322 = vsyncpa [#allocation3], 1

</llo_original>
